<compile_context>
chip_gen: v5e
topology: v5e:2x2
jax: 0.10.0
libtpu: 0.0.40
codegen_flags: <defaults>
</compile_context>

<pallas_src>
import functools

import jax
import jax.numpy as jnp
from jax.experimental import pallas as pl
from jax.experimental.pallas import tpu as pltpu


def _round_up(v, m):
    return ((v + m - 1) // m) * m


def mdn_kernel(x_ref,
               w1_ref, b1_ref,
               w2_ref, b2_ref,
               wh_ref, bh_ref,
               out_ref, *, n_components):
    K = n_components
    x = x_ref[...]                                                    # (bm, in_dim)

    # trunk: Linear + ReLU, Linear + ReLU (f32 accumulation on the MXU)
    h1 = jnp.dot(x, w1_ref[...], preferred_element_type=jnp.float32) + b1_ref[...]
    h1 = jnp.maximum(h1, 0.0).astype(w2_ref.dtype)                    # cast only for the matmul
    h2 = jnp.dot(h1, w2_ref[...], preferred_element_type=jnp.float32) + b2_ref[...]
    h2 = jnp.maximum(h2, 0.0).astype(wh_ref.dtype)                    # (bm, H)

    # fused, lane-padded head projection: [logits | log_scales | shapes | pad]
    z = jnp.dot(h2, wh_ref[...], preferred_element_type=jnp.float32) + bh_ref[...]  # (bm, out_w)

    # Whole-vreg masked math: no sub-128-lane slices, no concatenate.
    lane = jax.lax.broadcasted_iota(jnp.int32, z.shape, 1)
    is_logit = lane < K

    # mixture weights: stable softmax over the first K lanes; exact division so
    # each row of pi sums to 1 (fixes the previous approx-reciprocal drift).
    masked_logits = jnp.where(is_logit, z, -jnp.inf)
    m = jnp.max(masked_logits, axis=-1, keepdims=True)
    e = jnp.where(is_logit, jnp.exp(z - m), 0.0)
    denom = jnp.sum(e, axis=-1, keepdims=True)
    pi = e / denom

    # Weibull scale (lambda) and concentration (k): softplus over all lanes,
    # then the per-head epsilon via a lane select.  (log(1+exp(-|z|)) instead of
    # log1p keeps the lowering to plain exp/log ops.)
    sp = jnp.maximum(z, 0.0) + jnp.log(1.0 + jnp.exp(-jnp.abs(z)))
    sp = sp + jnp.where(lane < 2 * K, 1e-6, 1e-3)

    # single lane-dense packed write: [pi | lam | k | (pad lanes, sliced off)]
    out_ref[...] = jnp.where(is_logit, pi, sp)


def prepare_params(params, compute_dtype=jnp.bfloat16):
    """One-time parameter prep: fuse the 3 heads, pad to a lane-dense width,
    optionally cast matmul inputs to bf16 (biases stay f32)."""
    (w1, b1), (w2, b2), (wl, bl), (ws, bs), (wk, bk) = params
    K = wl.shape[1]
    wh = jnp.concatenate([wl, ws, wk], axis=1)       # (H, 3K)
    bh = jnp.concatenate([bl, bs, bk], axis=1)       # (1, 3K)

    out_w = _round_up(3 * K, 128)                    # lane-dense head / output width
    pad = out_w - 3 * K
    if pad:
        wh = jnp.pad(wh, ((0, 0), (0, pad)))
        bh = jnp.pad(bh, ((0, 0), (0, pad)))

    if compute_dtype is not None:
        w1 = w1.astype(compute_dtype)
        w2 = w2.astype(compute_dtype)
        wh = wh.astype(compute_dtype)
        # biases stay f32 (added after f32 accumulation)

    return {"w1": w1, "b1": b1, "w2": w2, "b2": b2, "wh": wh, "bh": bh,
            "K": K, "out_w": out_w}


def weibull_mdn_forward(x, prepared, *, block_m=512):
    """WeibullMDN forward. Returns (pi, lam, k), each (B, K) float32."""
    w1, b1 = prepared["w1"], prepared["b1"]
    w2, b2 = prepared["w2"], prepared["b2"]
    wh, bh = prepared["wh"], prepared["bh"]
    K, out_w = prepared["K"], prepared["out_w"]

    B, in_dim = x.shape
    H = w1.shape[1]
    x = x.astype(w1.dtype)                            # halves the x-tile DMA in bf16 mode

    # ---- batch tile selection -------------------------------------------------
    # Big tiles amortize per-grid-step overhead (this kernel is overhead / store
    # bound, not MXU bound), but keep >= 2 grid steps so the "parallel" axis can
    # be sharded across both v7x TensorCores.
    bm = _round_up(block_m, 8)
    bm = min(bm, _round_up(max(-(-B // 2), 1), 8))

    # Explicit VMEM budget (safe within v7x's 64 MiB physical / 32 MiB default
    # scoped limit): double-buffered params + x/out tiles + f32 intermediates.
    vmem_limit = 32 * 1024 * 1024
    itemsize = jnp.dtype(w1.dtype).itemsize
    param_bytes = 2 * (in_dim * H + H * H + H * out_w) * itemsize \
                  + 2 * (H + H + out_w) * 4
    per_row = 2 * in_dim * itemsize + 2 * out_w * 4 + 3 * H * 4
    bm_cap = max(8, ((vmem_limit // 2 - param_bytes) // per_row) // 8 * 8)
    bm = max(8, min(bm, bm_cap))

    B_pad = _round_up(B, bm)
    if B_pad != B:
        x = jnp.pad(x, ((0, B_pad - B), (0, 0)))
    grid = (B_pad // bm,)

    x_map = lambda i: (i, 0)
    p_map = lambda i: (0, 0)   # parameters: same full block every grid step
    full = lambda shape: pl.BlockSpec(shape, p_map)

    kernel = functools.partial(mdn_kernel, n_components=K)

    out = pl.pallas_call(
        kernel,
        grid=grid,
        in_specs=[
            pl.BlockSpec((bm, in_dim), x_map),
            full((in_dim, H)), full((1, H)),
            full((H, H)), full((1, H)),
            full((H, out_w)), full((1, out_w)),
        ],
        out_specs=pl.BlockSpec((bm, out_w), x_map),
        out_shape=jax.ShapeDtypeStruct((B_pad, out_w), jnp.float32),
        compiler_params=pltpu.CompilerParams(
            dimension_semantics=("parallel",),
            vmem_limit_bytes=vmem_limit),
    )(x, w1, b1, w2, b2, wh, bh)

    pi = out[:B, :K]
    lam = out[:B, K:2 * K]
    k = out[:B, 2 * K:3 * K]
    return pi, lam, k


def init_params(key, in_dim, hidden_dim, n_components):
    """Deterministic init mimicking torch.nn.Linear (uniform +-1/sqrt(fan_in)).
    Weights stored as [in_features, out_features]."""
    def linear(k, fan_in, fan_out):
        kw, kb = jax.random.split(k)
        bound = 1.0 / jnp.sqrt(float(fan_in))
        w = jax.random.uniform(kw, (fan_in, fan_out), jnp.float32, -bound, bound)
        b = jax.random.uniform(kb, (1, fan_out), jnp.float32, -bound, bound)
        return w, b

    keys = jax.random.split(key, 5)
    return (
        linear(keys[0], in_dim, hidden_dim),        # net[0]
        linear(keys[1], hidden_dim, hidden_dim),    # net[2]
        linear(keys[2], hidden_dim, n_components),  # logits
        linear(keys[3], hidden_dim, n_components),  # log_scales
        linear(keys[4], hidden_dim, n_components),  # shapes
    )


def reference_forward(x, params):
    """Pure-JAX reference for correctness checking."""
    (w1, b1), (w2, b2), (wl, bl), (ws, bs), (wk, bk) = params
    h = jax.nn.relu(x @ w1 + b1)
    h = jax.nn.relu(h @ w2 + b2)
    pi = jax.nn.softmax(h @ wl + bl, axis=-1)
    lam = jax.nn.softplus(h @ ws + bs) + 1e-6
    k = jax.nn.softplus(h @ wk + bk) + 1e-3
    return pi, lam, k


if __name__ == "__main__":
    # Small shapes consistent with the module defaults: in_dim=5, hidden=128, K=8.
    # batch=256 keeps a 2-step parallel grid (both v7x TensorCores busy).
    B, IN_DIM, HIDDEN, K = 256, 5, 128, 8

    key = jax.random.PRNGKey(0)
    kx, kp = jax.random.split(key)
    x = jax.random.normal(kx, (B, IN_DIM), dtype=jnp.float32)
    params = init_params(kp, IN_DIM, HIDDEN, K)

    pi_r, lam_r, k_r = reference_forward(x, params)

    # --- f32 matmul-input path: tighter correctness check ----------------------
    prep_f32 = prepare_params(params, compute_dtype=None)
    pi, lam, kk = weibull_mdn_forward(x, prep_f32, block_m=512)
    jax.block_until_ready((pi, lam, kk))

    assert jnp.allclose(pi, pi_r, atol=2e-2, rtol=2e-2)
    assert jnp.allclose(lam, lam_r, atol=2e-2, rtol=2e-2)
    assert jnp.allclose(kk, k_r, atol=2e-2, rtol=2e-2)
    # exact division in the kernel -> rows of pi sum to 1 to f32 rounding
    assert jnp.allclose(jnp.sum(pi, axis=-1), 1.0, atol=1e-3)

    # --- bf16 matmul-input path (production default on all TPU generations) ----
    prep_bf16 = prepare_params(params, compute_dtype=jnp.bfloat16)
    pi_b, lam_b, k_b = weibull_mdn_forward(x, prep_bf16, block_m=512)
    jax.block_until_ready((pi_b, lam_b, k_b))

    assert bool(jnp.all(jnp.isfinite(pi_b)))
    assert bool(jnp.all(jnp.isfinite(lam_b)))
    assert bool(jnp.all(jnp.isfinite(k_b)))
    assert jnp.allclose(jnp.sum(pi_b, axis=-1), 1.0, atol=1e-3)
    # bf16 input quantization is not recovered by f32 accumulation -> loose check
    assert jnp.allclose(pi_b, pi_r, atol=6e-2, rtol=6e-2)
    assert jnp.allclose(lam_b, lam_r, atol=6e-2, rtol=6e-2)
    assert jnp.allclose(k_b, k_r, atol=6e-2, rtol=6e-2)

    # TODO(synk): MixtureSameFamily/Categorical/Weibull distribution objects have
    # no Pallas equivalent; the kernel returns their parameters (pi, lam, k).
    print("KERNEL_OK")
</pallas_src>

<mosaic_0001>
module attributes {stable_mosaic.version = 11 : i64} {
  func.func @mdn_kernel(%arg0: i32, %arg1: memref<128x5xf32, #tpu.memory_space<vmem>>, %arg2: memref<5x128xf32, #tpu.memory_space<vmem>>, %arg3: memref<1x128xf32, #tpu.memory_space<vmem>>, %arg4: memref<128x128xf32, #tpu.memory_space<vmem>>, %arg5: memref<1x128xf32, #tpu.memory_space<vmem>>, %arg6: memref<128x128xf32, #tpu.memory_space<vmem>>, %arg7: memref<1x128xf32, #tpu.memory_space<vmem>>, %arg8: memref<128x128xf32, #tpu.memory_space<vmem>>) attributes {dimension_semantics = [#tpu.dimension_semantics<parallel>], iteration_bounds = array<i64: 2>, scalar_prefetch = 0 : i64, scratch_operands = 0 : i64, tpu.core_type = #tpu.core_type<tc>, window_params = [{transform_indices = @transform_0, window_bounds = array<i64: 128, 5>}, {pipeline_mode = #tpu.pipeline_mode<synchronous>, transform_indices = @transform_1, window_bounds = array<i64: 5, 128>}, {pipeline_mode = #tpu.pipeline_mode<synchronous>, transform_indices = @transform_2, window_bounds = array<i64: 1, 128>}, {pipeline_mode = #tpu.pipeline_mode<synchronous>, transform_indices = @transform_3, window_bounds = array<i64: 128, 128>}, {pipeline_mode = #tpu.pipeline_mode<synchronous>, transform_indices = @transform_4, window_bounds = array<i64: 1, 128>}, {pipeline_mode = #tpu.pipeline_mode<synchronous>, transform_indices = @transform_5, window_bounds = array<i64: 128, 128>}, {pipeline_mode = #tpu.pipeline_mode<synchronous>, transform_indices = @transform_6, window_bounds = array<i64: 1, 128>}, {transform_indices = @transform_7, window_bounds = array<i64: 128, 128>}]} {
    %c0 = arith.constant 0 : index
    %c0_0 = arith.constant 0 : index
    %0 = vector.load %arg1[%c0, %c0_0] : memref<128x5xf32, #tpu.memory_space<vmem>>, vector<128x5xf32>
    %c0_1 = arith.constant 0 : index
    %c0_2 = arith.constant 0 : index
    %1 = vector.load %arg2[%c0_1, %c0_2] : memref<5x128xf32, #tpu.memory_space<vmem>>, vector<5x128xf32>
    %cst = arith.constant dense<0.000000e+00> : vector<128x128xf32>
    %2 = tpu.matmul %0, %1, %cst {dimension_numbers = #tpu.dot_dimension_numbers<[1], [0], [0], [1], [0, 0, 1, 1], [], []>} : vector<128x5xf32>, vector<5x128xf32>, vector<128x128xf32> -> vector<128x128xf32>
    %c0_3 = arith.constant 0 : index
    %c0_4 = arith.constant 0 : index
    %3 = vector.load %arg3[%c0_3, %c0_4] : memref<1x128xf32, #tpu.memory_space<vmem>>, vector<1x128xf32>
    %4 = vector.broadcast %3 : vector<1x128xf32> to vector<128x128xf32>
    %5 = arith.addf %2, %4 : vector<128x128xf32>
    %cst_5 = arith.constant 0.000000e+00 : f32
    %6 = vector.broadcast %cst_5 : f32 to vector<128x128xf32>
    %7 = arith.maximumf %5, %6 : vector<128x128xf32>
    %c0_6 = arith.constant 0 : index
    %c0_7 = arith.constant 0 : index
    %8 = vector.load %arg4[%c0_6, %c0_7] : memref<128x128xf32, #tpu.memory_space<vmem>>, vector<128x128xf32>
    %cst_8 = arith.constant dense<0.000000e+00> : vector<128x128xf32>
    %9 = tpu.matmul %7, %8, %cst_8 {dimension_numbers = #tpu.dot_dimension_numbers<[1], [0], [0], [1], [0, 0, 1, 1], [], []>} : vector<128x128xf32>, vector<128x128xf32>, vector<128x128xf32> -> vector<128x128xf32>
    %c0_9 = arith.constant 0 : index
    %c0_10 = arith.constant 0 : index
    %10 = vector.load %arg5[%c0_9, %c0_10] : memref<1x128xf32, #tpu.memory_space<vmem>>, vector<1x128xf32>
    %11 = vector.broadcast %10 : vector<1x128xf32> to vector<128x128xf32>
    %12 = arith.addf %9, %11 : vector<128x128xf32>
    %cst_11 = arith.constant 0.000000e+00 : f32
    %13 = vector.broadcast %cst_11 : f32 to vector<128x128xf32>
    %14 = arith.maximumf %12, %13 : vector<128x128xf32>
    %c0_12 = arith.constant 0 : index
    %c0_13 = arith.constant 0 : index
    %15 = vector.load %arg6[%c0_12, %c0_13] : memref<128x128xf32, #tpu.memory_space<vmem>>, vector<128x128xf32>
    %cst_14 = arith.constant dense<0.000000e+00> : vector<128x128xf32>
    %16 = tpu.matmul %14, %15, %cst_14 {dimension_numbers = #tpu.dot_dimension_numbers<[1], [0], [0], [1], [0, 0, 1, 1], [], []>} : vector<128x128xf32>, vector<128x128xf32>, vector<128x128xf32> -> vector<128x128xf32>
    %c0_15 = arith.constant 0 : index
    %c0_16 = arith.constant 0 : index
    %17 = vector.load %arg7[%c0_15, %c0_16] : memref<1x128xf32, #tpu.memory_space<vmem>>, vector<1x128xf32>
    %18 = vector.broadcast %17 : vector<1x128xf32> to vector<128x128xf32>
    %19 = arith.addf %16, %18 : vector<128x128xf32>
    %20 = tpu.iota {dimensions = array<i32: 1>} : vector<128x128xi32>
    %c8_i32 = arith.constant 8 : i32
    %21 = vector.broadcast %c8_i32 : i32 to vector<128x128xi32>
    %22 = arith.cmpi slt, %20, %21 : vector<128x128xi32>
    %cst_17 = arith.constant 0xFF800000 : f32
    %23 = vector.broadcast %cst_17 : f32 to vector<128x128xf32>
    %24 = arith.select %22, %19, %23 : vector<128x128xi1>, vector<128x128xf32>
    %cst_18 = arith.constant dense<0xFF800000> : vector<128xf32>
    %25 = vector.multi_reduction <maximumf>, %24, %cst_18 [1] : vector<128x128xf32> to vector<128xf32>
    %26 = vector.shape_cast %25 : vector<128xf32> to vector<128x1xf32>
    %27 = vector.broadcast %26 : vector<128x1xf32> to vector<128x128xf32>
    %28 = arith.subf %19, %27 : vector<128x128xf32>
    %29 = math.exp %28 : vector<128x128xf32>
    %cst_19 = arith.constant 0.000000e+00 : f32
    %30 = vector.broadcast %cst_19 : f32 to vector<128x128xf32>
    %31 = arith.select %22, %29, %30 : vector<128x128xi1>, vector<128x128xf32>
    %cst_20 = arith.constant dense<0.000000e+00> : vector<128xf32>
    %32 = vector.multi_reduction <add>, %31, %cst_20 [1] : vector<128x128xf32> to vector<128xf32>
    %33 = vector.shape_cast %32 : vector<128xf32> to vector<128x1xf32>
    %34 = vector.broadcast %33 : vector<128x1xf32> to vector<128x128xf32>
    %35 = arith.divf %31, %34 : vector<128x128xf32>
    %cst_21 = arith.constant 0.000000e+00 : f32
    %36 = vector.broadcast %cst_21 : f32 to vector<128x128xf32>
    %37 = arith.maximumf %19, %36 : vector<128x128xf32>
    %38 = math.absf %19 : vector<128x128xf32>
    %cst_22 = arith.constant 0.000000e+00 : f32
    %39 = vector.broadcast %cst_22 : f32 to vector<128x128xf32>
    %40 = arith.subf %39, %38 : vector<128x128xf32>
    %41 = math.exp %40 : vector<128x128xf32>
    %cst_23 = arith.constant 1.000000e+00 : f32
    %42 = vector.broadcast %cst_23 : f32 to vector<128x128xf32>
    %43 = arith.addf %42, %41 : vector<128x128xf32>
    %44 = math.log %43 : vector<128x128xf32>
    %45 = arith.addf %37, %44 : vector<128x128xf32>
    %c16_i32 = arith.constant 16 : i32
    %46 = vector.broadcast %c16_i32 : i32 to vector<128x128xi32>
    %47 = arith.cmpi slt, %20, %46 : vector<128x128xi32>
    %cst_24 = arith.constant 9.99999997E-7 : f32
    %cst_25 = arith.constant 1.000000e-03 : f32
    %48 = vector.broadcast %cst_24 : f32 to vector<128x128xf32>
    %49 = vector.broadcast %cst_25 : f32 to vector<128x128xf32>
    %50 = arith.select %47, %48, %49 : vector<128x128xi1>, vector<128x128xf32>
    %51 = arith.addf %45, %50 : vector<128x128xf32>
    %52 = arith.select %22, %35, %51 : vector<128x128xi1>, vector<128x128xf32>
    %c0_26 = arith.constant 0 : index
    %c0_27 = arith.constant 0 : index
    %53 = vector.load %arg8[%c0_26, %c0_27] : memref<128x128xf32, #tpu.memory_space<vmem>>, vector<128x128xf32>
    tpu.vector_store %arg8[%c0_26, %c0_27], %52 {strides = array<i32>} : memref<128x128xf32, #tpu.memory_space<vmem>>, vector<128x128xf32>,
    return
  }
  func.func @transform_0(%arg0: i32) -> (i32, i32) {
    %c0_i32 = arith.constant 0 : i32
    %c0_i32_0 = arith.constant 0 : i32
    return %arg0, %c0_i32 : i32, i32
  }
  func.func @transform_1(%arg0: i32) -> (i32, i32) {
    %c0_i32 = arith.constant 0 : i32
    %c0_i32_0 = arith.constant 0 : i32
    %c0_i32_1 = arith.constant 0 : i32
    return %c0_i32, %c0_i32_0 : i32, i32
  }
  func.func @transform_2(%arg0: i32) -> (i32, i32) {
    %c0_i32 = arith.constant 0 : i32
    %c0_i32_0 = arith.constant 0 : i32
    %c0_i32_1 = arith.constant 0 : i32
    return %c0_i32, %c0_i32_0 : i32, i32
  }
  func.func @transform_3(%arg0: i32) -> (i32, i32) {
    %c0_i32 = arith.constant 0 : i32
    %c0_i32_0 = arith.constant 0 : i32
    %c0_i32_1 = arith.constant 0 : i32
    return %c0_i32, %c0_i32_0 : i32, i32
  }
  func.func @transform_4(%arg0: i32) -> (i32, i32) {
    %c0_i32 = arith.constant 0 : i32
    %c0_i32_0 = arith.constant 0 : i32
    %c0_i32_1 = arith.constant 0 : i32
    return %c0_i32, %c0_i32_0 : i32, i32
  }
  func.func @transform_5(%arg0: i32) -> (i32, i32) {
    %c0_i32 = arith.constant 0 : i32
    %c0_i32_0 = arith.constant 0 : i32
    %c0_i32_1 = arith.constant 0 : i32
    return %c0_i32, %c0_i32_0 : i32, i32
  }
  func.func @transform_6(%arg0: i32) -> (i32, i32) {
    %c0_i32 = arith.constant 0 : i32
    %c0_i32_0 = arith.constant 0 : i32
    %c0_i32_1 = arith.constant 0 : i32
    return %c0_i32, %c0_i32_0 : i32, i32
  }
  func.func @transform_7(%arg0: i32) -> (i32, i32) {
    %c0_i32 = arith.constant 0 : i32
    %c0_i32_0 = arith.constant 0 : i32
    return %arg0, %c0_i32 : i32, i32
  }
}

</mosaic_0001>

<llo_original>
// kernel: tpu_custom_call.1
$region0: #{tpu_custom_call.1}
  #allocation0 [shape = 'u32[]', space=smem, size = 0x4, offset = 0x4, fixed_abs, tag = 'smem constant byte address 0x4 - core index']
  #allocation1 [shape = 'u32[72,128]{1,0:T(1,128)}', space=vmem, size = 0x9000, scoped, tag = 'internal scratch']
  %s0 = inlined_call_operand.vmem [shape: f32[256,5], index: 0, kind: input, shape index: {}]
  %s1 = inlined_call_operand.vmem [shape: f32[5,128], index: 1, kind: input, shape index: {}]
  %s2 = inlined_call_operand.vmem [shape: f32[1,128], index: 2, kind: input, shape index: {}]
  %s3 = inlined_call_operand.vmem [shape: f32[128,128], index: 3, kind: input, shape index: {}]
  %s4 = inlined_call_operand.vmem [shape: f32[1,128], index: 4, kind: input, shape index: {}]
  %s5 = inlined_call_operand.vmem [shape: f32[128,128], index: 5, kind: input, shape index: {}]
  %s6 = inlined_call_operand.vmem [shape: f32[1,128], index: 6, kind: input, shape index: {}]
  %s7 = inlined_call_operand.hbm [shape: f32[256,128], index: 7, kind: output, shape index: {}]
  %s8 = sld [smem:[#allocation0]]
  $region61: #{tpu_custom_call.1} parent=0
    _
  %s10 = ssub.s32 1, %s8
  %s11 = scalar_select 0, %s10, %s8
  $region1: #{tpu_custom_call.1} parent=0
    #allocation2 [shape = 'u8[131072]{0}', space=vmem, size = 0x20000, scoped, tag = 'output window, operand 0']
    #allocation3 [shape = 's32[2]{0}', space=sflag, size = 0x8, scoped, tag = 'scoped memory for tpu_custom_call.1']
    %12 = vsyncpa [#allocation3], 0
    %s13 = scalar_lea.sflag [#allocation3], 1
    %14 = vsyncpa %s13, 0
    loop: start=0, step=1, limit=4
    $region2: #{tpu_custom_call.1} parent=1 // loop_pre_header
      _
    $region3: #{tpu_custom_call.1} parent=1 // loop_header
      %s16 = sphi 0, %s20
      %p17 = scmp.ge.s32.totalorder %s16, 4
      %s26 = sphi 0, %s28
      %s29 = sphi 0, %s26
      %s30 = sphi 0, %s29
      %s46 = sphi 0, %s30
      %s50 = sphi 0, %s50
      %s52 = sphi 0, %s50
      %s53 = sphi 0, %s52
      %s67 = sphi 0, %s53
      %s71 = sphi 0, %s71
      %s73 = sphi 0, %s71
      %s74 = sphi 0, %s73
      %s88 = sphi 0, %s74
      %s92 = sphi 0, %s92
      %s94 = sphi 0, %s92
      %s95 = sphi 0, %s94
      %s109 = sphi 0, %s95
      %s113 = sphi 0, %s113
      %s115 = sphi 0, %s113
      %s116 = sphi 0, %s115
      %s130 = sphi 0, %s116
      %s134 = sphi 0, %s134
      %s136 = sphi 0, %s134
      %s137 = sphi 0, %s136
      %s151 = sphi 0, %s137
      %s155 = sphi 0, %s155
      %s157 = sphi 0, %s155
      %s158 = sphi 0, %s157
      %s172 = sphi 0, %s158
      %s178 = sphi 0, %s180
      %s181 = sphi 0, %s178
      %s182 = sphi 0, %s181
      %s198 = sphi 0, %s182
    $region4: #{tpu_custom_call.1} parent=1 // loop_header_branch
      %19 = sbr.rel (%p17) target = $region8
    $region5: #{tpu_custom_call.1} parent=1 // loop_body
      %s21 = ssub.s32 %s16, 1
      %s22 = ssub.s32 %s16, 2
      %s23 = sadd.s32 %s16, 1
      %s24 = ssub.s32 %s16, %s23
      %p25 = scmp.eq.s32.totalorder %s24, 0
      %s27 = sadd.s32 %s26, 1
      %s28 = scalar_select %p25, %s26, %s27
      %p31 = pneg %p25
      %p32 = scmp.eq.s32.totalorder %s16, 1
      %p33 = por %p31, %p32
      %p34 = scmp.ne.s32.totalorder %s26, %s29
      %p35 = scmp.eq.s32.totalorder %s16, 0
      %p36 = por %p34, %p35
      %p37 = scmp.ne.s32.totalorder %s26, %s29
      %p38 = scmp.eq.s32.totalorder %s21, 1
      %p39 = por %p37, %p38
      %p40 = scmp.ne.s32.totalorder %s29, %s30
      %p41 = scmp.eq.s32.totalorder %s21, 0
      %p42 = por %p40, %p41
      %p43 = scmp.ne.s32.totalorder %s29, %s30
      %p44 = scmp.eq.s32.totalorder %s22, 1
      %p45 = por %p43, %p44
      %p47 = scmp.ne.s32.totalorder %s30, %s46
      %p48 = scmp.eq.s32.totalorder %s22, 0
      %p49 = por %p47, %p48
      %s51 = sadd.s32 %s50, 1
      %p54 = scmp.eq.s32.totalorder %s16, 1
      %p55 = scmp.ne.s32.totalorder %s50, %s52
      %p56 = scmp.eq.s32.totalorder %s16, 0
      %p57 = por %p55, %p56
      %p58 = scmp.ne.s32.totalorder %s50, %s52
      %p59 = scmp.eq.s32.totalorder %s21, 1
      %p60 = por %p58, %p59
      %p61 = scmp.ne.s32.totalorder %s52, %s53
      %p62 = scmp.eq.s32.totalorder %s21, 0
      %p63 = por %p61, %p62
      %p64 = scmp.ne.s32.totalorder %s52, %s53
      %p65 = scmp.eq.s32.totalorder %s22, 1
      %p66 = por %p64, %p65
      %p68 = scmp.ne.s32.totalorder %s53, %s67
      %p69 = scmp.eq.s32.totalorder %s22, 0
      %p70 = por %p68, %p69
      %s72 = sadd.s32 %s71, 1
      %p75 = scmp.eq.s32.totalorder %s16, 1
      %p76 = scmp.ne.s32.totalorder %s71, %s73
      %p77 = scmp.eq.s32.totalorder %s16, 0
      %p78 = por %p76, %p77
      %p79 = scmp.ne.s32.totalorder %s71, %s73
      %p80 = scmp.eq.s32.totalorder %s21, 1
      %p81 = por %p79, %p80
      %p82 = scmp.ne.s32.totalorder %s73, %s74
      %p83 = scmp.eq.s32.totalorder %s21, 0
      %p84 = por %p82, %p83
      %p85 = scmp.ne.s32.totalorder %s73, %s74
      %p86 = scmp.eq.s32.totalorder %s22, 1
      %p87 = por %p85, %p86
      %p89 = scmp.ne.s32.totalorder %s74, %s88
      %p90 = scmp.eq.s32.totalorder %s22, 0
      %p91 = por %p89, %p90
      %s93 = sadd.s32 %s92, 1
      %p96 = scmp.eq.s32.totalorder %s16, 1
      %p97 = scmp.ne.s32.totalorder %s92, %s94
      %p98 = scmp.eq.s32.totalorder %s16, 0
      %p99 = por %p97, %p98
      %p100 = scmp.ne.s32.totalorder %s92, %s94
      %p101 = scmp.eq.s32.totalorder %s21, 1
      %p102 = por %p100, %p101
      %p103 = scmp.ne.s32.totalorder %s94, %s95
      %p104 = scmp.eq.s32.totalorder %s21, 0
      %p105 = por %p103, %p104
      %p106 = scmp.ne.s32.totalorder %s94, %s95
      %p107 = scmp.eq.s32.totalorder %s22, 1
      %p108 = por %p106, %p107
      %p110 = scmp.ne.s32.totalorder %s95, %s109
      %p111 = scmp.eq.s32.totalorder %s22, 0
      %p112 = por %p110, %p111
      %s114 = sadd.s32 %s113, 1
      %p117 = scmp.eq.s32.totalorder %s16, 1
      %p118 = scmp.ne.s32.totalorder %s113, %s115
      %p119 = scmp.eq.s32.totalorder %s16, 0
      %p120 = por %p118, %p119
      %p121 = scmp.ne.s32.totalorder %s113, %s115
      %p122 = scmp.eq.s32.totalorder %s21, 1
      %p123 = por %p121, %p122
      %p124 = scmp.ne.s32.totalorder %s115, %s116
      %p125 = scmp.eq.s32.totalorder %s21, 0
      %p126 = por %p124, %p125
      %p127 = scmp.ne.s32.totalorder %s115, %s116
      %p128 = scmp.eq.s32.totalorder %s22, 1
      %p129 = por %p127, %p128
      %p131 = scmp.ne.s32.totalorder %s116, %s130
      %p132 = scmp.eq.s32.totalorder %s22, 0
      %p133 = por %p131, %p132
      %s135 = sadd.s32 %s134, 1
      %p138 = scmp.eq.s32.totalorder %s16, 1
      %p139 = scmp.ne.s32.totalorder %s134, %s136
      %p140 = scmp.eq.s32.totalorder %s16, 0
      %p141 = por %p139, %p140
      %p142 = scmp.ne.s32.totalorder %s134, %s136
      %p143 = scmp.eq.s32.totalorder %s21, 1
      %p144 = por %p142, %p143
      %p145 = scmp.ne.s32.totalorder %s136, %s137
      %p146 = scmp.eq.s32.totalorder %s21, 0
      %p147 = por %p145, %p146
      %p148 = scmp.ne.s32.totalorder %s136, %s137
      %p149 = scmp.eq.s32.totalorder %s22, 1
      %p150 = por %p148, %p149
      %p152 = scmp.ne.s32.totalorder %s137, %s151
      %p153 = scmp.eq.s32.totalorder %s22, 0
      %p154 = por %p152, %p153
      %s156 = sadd.s32 %s155, 1
      %p159 = scmp.eq.s32.totalorder %s16, 1
      %p160 = scmp.ne.s32.totalorder %s155, %s157
      %p161 = scmp.eq.s32.totalorder %s16, 0
      %p162 = por %p160, %p161
      %p163 = scmp.ne.s32.totalorder %s155, %s157
      %p164 = scmp.eq.s32.totalorder %s21, 1
      %p165 = por %p163, %p164
      %p166 = scmp.ne.s32.totalorder %s157, %s158
      %p167 = scmp.eq.s32.totalorder %s21, 0
      %p168 = por %p166, %p167
      %p169 = scmp.ne.s32.totalorder %s157, %s158
      %p170 = scmp.eq.s32.totalorder %s22, 1
      %p171 = por %p169, %p170
      %p173 = scmp.ne.s32.totalorder %s158, %s172
      %p174 = scmp.eq.s32.totalorder %s22, 0
      %p175 = por %p173, %p174
      %s176 = ssub.s32 %s16, %s23
      %p177 = scmp.eq.s32.totalorder %s176, 0
      %s179 = sadd.s32 %s178, 1
      %s180 = scalar_select %p177, %s178, %s179
      %p183 = pneg %p177
      %p184 = scmp.eq.s32.totalorder %s16, 1
      %p185 = por %p183, %p184
      %p186 = scmp.ne.s32.totalorder %s178, %s181
      %p187 = scmp.eq.s32.totalorder %s16, 0
      %p188 = por %p186, %p187
      %p189 = scmp.ne.s32.totalorder %s178, %s181
      %p190 = scmp.eq.s32.totalorder %s21, 1
      %p191 = por %p189, %p190
      %p192 = scmp.ne.s32.totalorder %s181, %s182
      %p193 = scmp.eq.s32.totalorder %s21, 0
      %p194 = por %p192, %p193
      %p195 = scmp.ne.s32.totalorder %s181, %s182
      %p196 = scmp.eq.s32.totalorder %s22, 1
      %p197 = por %p195, %p196
      %p199 = scmp.ne.s32.totalorder %s182, %s198
      %p200 = scmp.eq.s32.totalorder %s22, 0
      %p201 = por %p199, %p200
      %p202 = scmp.le.s32.totalorder 1, %s16
      %p203 = scmp.lt.s32.totalorder %s16, 3
      %p204 = pnand %p202, %p203
      %p205 = pneg %p204
      // Predicated region
      $region9: #{tpu_custom_call.1} parent=5 // pred_check
        _
      $region10: #{tpu_custom_call.1} parent=5 // pred_check_branch
        %207 = sbr.rel (%p204) target = $region12
      $region11: #{tpu_custom_call.1} parent=5 // pred_region
        %s208 = ssub.s32 %s16, 1
        // Predicated region
        $region13: #{tpu_custom_call.1} parent=11 // pred_check
          %p209 = pneg %p63
        $region14: #{tpu_custom_call.1} parent=11 // pred_check_branch
          %211 = sbr.rel (%p209) target = $region16
        $region15: #{tpu_custom_call.1} parent=11 // pred_region
          _
        $region16: #{tpu_custom_call.1} parent=11 // pred_fallthru
          _
        // Predicated region
        $region17: #{tpu_custom_call.1} parent=11 // pred_check
          %p212 = pneg %p84
        $region18: #{tpu_custom_call.1} parent=11 // pred_check_branch
          %214 = sbr.rel (%p212) target = $region20
        $region19: #{tpu_custom_call.1} parent=11 // pred_region
          _
        $region20: #{tpu_custom_call.1} parent=11 // pred_fallthru
          _
        // Predicated region
        $region21: #{tpu_custom_call.1} parent=11 // pred_check
          %p215 = pneg %p105
        $region22: #{tpu_custom_call.1} parent=11 // pred_check_branch
          %217 = sbr.rel (%p215) target = $region24
        $region23: #{tpu_custom_call.1} parent=11 // pred_region
          _
        $region24: #{tpu_custom_call.1} parent=11 // pred_fallthru
          _
        // Predicated region
        $region25: #{tpu_custom_call.1} parent=11 // pred_check
          %p218 = pneg %p126
        $region26: #{tpu_custom_call.1} parent=11 // pred_check_branch
          %220 = sbr.rel (%p218) target = $region28
        $region27: #{tpu_custom_call.1} parent=11 // pred_region
          _
        $region28: #{tpu_custom_call.1} parent=11 // pred_fallthru
          _
        // Predicated region
        $region29: #{tpu_custom_call.1} parent=11 // pred_check
          %p221 = pneg %p147
        $region30: #{tpu_custom_call.1} parent=11 // pred_check_branch
          %223 = sbr.rel (%p221) target = $region32
        $region31: #{tpu_custom_call.1} parent=11 // pred_region
          _
        $region32: #{tpu_custom_call.1} parent=11 // pred_fallthru
          _
        // Predicated region
        $region33: #{tpu_custom_call.1} parent=11 // pred_check
          %p224 = pneg %p168
        $region34: #{tpu_custom_call.1} parent=11 // pred_check_branch
          %226 = sbr.rel (%p224) target = $region36
        $region35: #{tpu_custom_call.1} parent=11 // pred_region
          _
        $region36: #{tpu_custom_call.1} parent=11 // pred_fallthru
          _
      $region12: #{tpu_custom_call.1} parent=5 // pred_fallthru
        _
      %p227 = scmp.lt.s32.totalorder %s16, 2
      // Predicated region
      $region37: #{tpu_custom_call.1} parent=5 // pred_check
        %p228 = pneg %p227
      $region38: #{tpu_custom_call.1} parent=5 // pred_check_branch
        %230 = sbr.rel (%p228) target = $region40
      $region39: #{tpu_custom_call.1} parent=5 // pred_region
        // Predicated region
        $region41: #{tpu_custom_call.1} parent=39 // pred_check
          %p231 = pneg %p36
        $region42: #{tpu_custom_call.1} parent=39 // pred_check_branch
          %233 = sbr.rel (%p231) target = $region44
        $region43: #{tpu_custom_call.1} parent=39 // pred_region
          %s234 = smul.u32 16, %s16
          %p235 = scmp.lt.s32.totalorder %s234, 31
          %s236 = scalar_select %p235, %s234, 31
          %s237 = smul.addr %s236, 8
          %s238 = scalar_lea.vmem %s0, %s237
          %s239 = smul.u32 16, %s16
        $region44: #{tpu_custom_call.1} parent=39 // pred_fallthru
          _
      $region40: #{tpu_custom_call.1} parent=5 // pred_fallthru
        _
      %p240 = scmp.le.s32.totalorder 1, %s16
      %p241 = scmp.lt.s32.totalorder %s16, 3
      %p242 = pnand %p240, %p241
      %p243 = pneg %p242
      // Predicated region
      $region45: #{tpu_custom_call.1} parent=5 // pred_check
        _
      $region46: #{tpu_custom_call.1} parent=5 // pred_check_branch
        %245 = sbr.rel (%p242) target = $region48
      $region47: #{tpu_custom_call.1} parent=5 // pred_region
        %s246 = ssub.s32 %s16, 1
        %s247 = smul.u32 16, %s21
        %p248 = scmp.lt.s32.totalorder %s247, 31
        %s249 = scalar_select %p248, %s247, 31
        %s250 = smul.addr %s249, 8
        %s251 = scalar_lea.vmem %s0, %s250
        %p252 = pneg %p42
        %p253 = pneg %p39
        %p254 = pneg %p63
        %p255 = pneg %p60
        %p256 = pneg %p84
        %p257 = pneg %p81
        %p258 = pneg %p105
        %p259 = pneg %p102
        %p260 = pneg %p126
        %p261 = pneg %p123
        %p262 = pneg %p147
        %p263 = pneg %p144
        %p264 = pneg %p168
        %p265 = pneg %p165
        %p266 = pneg %p194
        %p267 = pneg %p191
        %s268 = sand.u32 %s181, 1
        %s269 = scalar_lea.sflag [#allocation3], %s268
        %s270 = sand.u32 %s181, 1
        %s271 = smul.addr %s270, 128
        %s272 = scalar_lea.vmem [#allocation2], %s271
        %s273 = smul.u32 16, %s21
        %p274 = scmp.lt.s32.totalorder %s273, 31
        %s275 = scalar_select %p274, %s273, 31
        %s276 = smul.addr %s275, 8
        %s277 = scalar_lea.vmem %s0, %s276
        %s278 = smul.u32 16, %s21
        %s279 = smul.u32 16, %s21
        %v280 = vld [vmem:[%s277] sm:$0xff]
        %v281 = vld [vmem:[%s277 + $0x8] sm:$0xff]
        %v282 = vld [vmem:[%s277 + $0x10] sm:$0xff]
        %v283 = vld [vmem:[%s277 + $0x18] sm:$0xff]
        %v284 = vld [vmem:[%s277 + $0x20] sm:$0xff]
        %v285 = vld [vmem:[%s277 + $0x28] sm:$0xff]
        %v286 = vld [vmem:[%s277 + $0x30] sm:$0xff]
        %v287 = vld [vmem:[%s277 + $0x38] sm:$0xff]
        %v288 = vld [vmem:[%s277 + $0x40] sm:$0xff]
        %v289 = vld [vmem:[%s277 + $0x48] sm:$0xff]
        %v290 = vld [vmem:[%s277 + $0x50] sm:$0xff]
        %v291 = vld [vmem:[%s277 + $0x58] sm:$0xff]
        %v292 = vld [vmem:[%s277 + $0x60] sm:$0xff]
        %v293 = vld [vmem:[%s277 + $0x68] sm:$0xff]
        %v294 = vld [vmem:[%s277 + $0x70] sm:$0xff]
        %v295 = vld [vmem:[%s277 + $0x78] sm:$0xff]
        %v296 = vld [vmem:[%s1] sm:$0x1f]
        %v297 = vld [vmem:[%s2] sm:$0x1]
        %v299 = vperm.slane %v297, 0
        %vm301 = vcmask 39936
        %v303 = vsel %vm301, %v280, 0
        %v306 = vsel %vm301, %v281, 0
        %v309 = vsel %vm301, %v282, 0
        %v312 = vsel %vm301, %v283, 0
        %v315 = vsel %vm301, %v284, 0
        %v318 = vsel %vm301, %v285, 0
        %v321 = vsel %vm301, %v286, 0
        %v324 = vsel %vm301, %v287, 0
        %v327 = vsel %vm301, %v288, 0
        %v330 = vsel %vm301, %v289, 0
        %v333 = vsel %vm301, %v290, 0
        %v336 = vsel %vm301, %v291, 0
        %v339 = vsel %vm301, %v292, 0
        %v342 = vsel %vm301, %v293, 0
        %v345 = vsel %vm301, %v294, 0
        %v348 = vsel %vm301, %v295, 0
        %vm350 = vcmask 1044480
        %v352 = vsel %vm350, %v296, 0
        %354 = vmatpush.msra.mxu0 0.0
        %355 = vmatpush.msra.mxu0 0.0
        %356 = vmatpush.msra.mxu0 0.0
        %357 = vmatpush.msra.mxu0 0.0
        %358 = vmatpush.msra.mxu0 0.0
        %359 = vmatpush.msra.mxu0 0.0
        %360 = vmatpush.msra.mxu0 0.0
        %361 = vmatpush.msra.mxu0 0.0
        %362 = vmatpush.msra.mxu0 0.0
        %363 = vmatpush.msra.mxu0 0.0
        %364 = vmatpush.msra.mxu0 0.0
        %365 = vmatpush.msra.mxu0 0.0
        %366 = vmatpush.msra.mxu0 0.0
        %367 = vmatpush.msra.mxu0 0.0
        %368 = vmatpush.msra.mxu0 0.0
        %369 = vmatpush.msra.mxu0 %v352
        %370 = vmatmul.f32.gmra.mxu0 %v303
        %v371 = vpop.f32.mrf.mxu0
        %v372 = vadd.f32 %v299, %v371
        %373 = vmatmul.f32.gmra.mxu0 %v306
        %v374 = vpop.f32.mrf.mxu0
        %v375 = vadd.f32 %v299, %v374
        %376 = vmatmul.f32.gmra.mxu0 %v309
        %v377 = vpop.f32.mrf.mxu0
        %v378 = vadd.f32 %v299, %v377
        %379 = vmatmul.f32.gmra.mxu0 %v312
        %v380 = vpop.f32.mrf.mxu0
        %v381 = vadd.f32 %v299, %v380
        %382 = vmatmul.f32.gmra.mxu0 %v315
        %v383 = vpop.f32.mrf.mxu0
        %v384 = vadd.f32 %v299, %v383
        %385 = vmatmul.f32.gmra.mxu0 %v318
        %v386 = vpop.f32.mrf.mxu0
        %v387 = vadd.f32 %v299, %v386
        %388 = vmatmul.f32.gmra.mxu0 %v321
        %v389 = vpop.f32.mrf.mxu0
        %v390 = vadd.f32 %v299, %v389
        %391 = vmatmul.f32.gmra.mxu0 %v324
        %v392 = vpop.f32.mrf.mxu0
        %v393 = vadd.f32 %v299, %v392
        %394 = vmatmul.f32.gmra.mxu0 %v327
        %v395 = vpop.f32.mrf.mxu0
        %v396 = vadd.f32 %v299, %v395
        %397 = vmatmul.f32.gmra.mxu0 %v330
        %v398 = vpop.f32.mrf.mxu0
        %v399 = vadd.f32 %v299, %v398
        %400 = vmatmul.f32.gmra.mxu0 %v333
        %v401 = vpop.f32.mrf.mxu0
        %v402 = vadd.f32 %v299, %v401
        %403 = vmatmul.f32.gmra.mxu0 %v336
        %v404 = vpop.f32.mrf.mxu0
        %v405 = vadd.f32 %v299, %v404
        %406 = vmatmul.f32.gmra.mxu0 %v339
        %v407 = vpop.f32.mrf.mxu0
        %v408 = vadd.f32 %v299, %v407
        %409 = vmatmul.f32.gmra.mxu0 %v342
        %v410 = vpop.f32.mrf.mxu0
        %v411 = vadd.f32 %v299, %v410
        %412 = vmatmul.f32.gmra.mxu0 %v345
        %v413 = vpop.f32.mrf.mxu0
        %v414 = vadd.f32 %v299, %v413
        %415 = vmatmul.f32.gmra.mxu0 %v348
        %v416 = vpop.f32.mrf.mxu0
        %v417 = vadd.f32 %v299, %v416
        %418 = vdwg.mxu0
        %v419 = vmax.f32 %v372, 0.0
        %v420 = vmax.f32 %v375, 0.0
        %v421 = vmax.f32 %v378, 0.0
        %v422 = vmax.f32 %v381, 0.0
        %v423 = vmax.f32 %v384, 0.0
        %v424 = vmax.f32 %v387, 0.0
        %v425 = vmax.f32 %v390, 0.0
        %v426 = vmax.f32 %v393, 0.0
        %v427 = vmax.f32 %v396, 0.0
        %v428 = vmax.f32 %v399, 0.0
        %v429 = vmax.f32 %v402, 0.0
        %v430 = vmax.f32 %v405, 0.0
        %v431 = vmax.f32 %v408, 0.0
        %v432 = vmax.f32 %v411, 0.0
        %v433 = vmax.f32 %v414, 0.0
        %v434 = vmax.f32 %v417, 0.0
        %v435 = vld [vmem:[%s3] sm:$0xff]
        %v436 = vld [vmem:[%s3 + $0x8] sm:$0xff]
        %v437 = vld [vmem:[%s3 + $0x10] sm:$0xff]
        %v438 = vld [vmem:[%s3 + $0x18] sm:$0xff]
        %v439 = vld [vmem:[%s3 + $0x20] sm:$0xff]
        %v440 = vld [vmem:[%s3 + $0x28] sm:$0xff]
        %v441 = vld [vmem:[%s3 + $0x30] sm:$0xff]
        %v442 = vld [vmem:[%s3 + $0x38] sm:$0xff]
        %v443 = vld [vmem:[%s3 + $0x40] sm:$0xff]
        %v444 = vld [vmem:[%s3 + $0x48] sm:$0xff]
        %v445 = vld [vmem:[%s3 + $0x50] sm:$0xff]
        %v446 = vld [vmem:[%s3 + $0x58] sm:$0xff]
        %v447 = vld [vmem:[%s3 + $0x60] sm:$0xff]
        %v448 = vld [vmem:[%s3 + $0x68] sm:$0xff]
        %v449 = vld [vmem:[%s3 + $0x70] sm:$0xff]
        %v450 = vld [vmem:[%s3 + $0x78] sm:$0xff]
        %v451 = vld [vmem:[%s4] sm:$0x1]
        %v453 = vperm.slane %v451, 0
        %455 = vmatpush.msra.mxu0 %v450
        %456 = vmatpush.msra.mxu0 %v449
        %457 = vmatpush.msra.mxu0 %v448
        %458 = vmatpush.msra.mxu0 %v447
        %459 = vmatpush.msra.mxu0 %v446
        %460 = vmatpush.msra.mxu0 %v445
        %461 = vmatpush.msra.mxu0 %v444
        %462 = vmatpush.msra.mxu0 %v443
        %463 = vmatpush.msra.mxu0 %v442
        %464 = vmatpush.msra.mxu0 %v441
        %465 = vmatpush.msra.mxu0 %v440
        %466 = vmatpush.msra.mxu0 %v439
        %467 = vmatpush.msra.mxu0 %v438
        %468 = vmatpush.msra.mxu0 %v437
        %469 = vmatpush.msra.mxu0 %v436
        %470 = vmatpush.msra.mxu0 %v435
        %471 = vmatmul.f32.gmra.mxu0 %v419
        %v472 = vpop.f32.mrf.mxu0
        %v473 = vadd.f32 %v453, %v472
        %474 = vmatmul.f32.gmra.mxu0 %v420
        %v475 = vpop.f32.mrf.mxu0
        %v476 = vadd.f32 %v453, %v475
        %477 = vmatmul.f32.gmra.mxu0 %v421
        %v478 = vpop.f32.mrf.mxu0
        %v479 = vadd.f32 %v453, %v478
        %480 = vmatmul.f32.gmra.mxu0 %v422
        %v481 = vpop.f32.mrf.mxu0
        %v482 = vadd.f32 %v453, %v481
        %483 = vmatmul.f32.gmra.mxu0 %v423
        %v484 = vpop.f32.mrf.mxu0
        %v485 = vadd.f32 %v453, %v484
        %486 = vmatmul.f32.gmra.mxu0 %v424
        %v487 = vpop.f32.mrf.mxu0
        %v488 = vadd.f32 %v453, %v487
        %489 = vmatmul.f32.gmra.mxu0 %v425
        %v490 = vpop.f32.mrf.mxu0
        %v491 = vadd.f32 %v453, %v490
        %492 = vmatmul.f32.gmra.mxu0 %v426
        %v493 = vpop.f32.mrf.mxu0
        %v494 = vadd.f32 %v453, %v493
        %495 = vmatmul.f32.gmra.mxu0 %v427
        %v496 = vpop.f32.mrf.mxu0
        %v497 = vadd.f32 %v453, %v496
        %498 = vmatmul.f32.gmra.mxu0 %v428
        %v499 = vpop.f32.mrf.mxu0
        %v500 = vadd.f32 %v453, %v499
        %501 = vmatmul.f32.gmra.mxu0 %v429
        %v502 = vpop.f32.mrf.mxu0
        %v503 = vadd.f32 %v453, %v502
        %504 = vmatmul.f32.gmra.mxu0 %v430
        %v505 = vpop.f32.mrf.mxu0
        %v506 = vadd.f32 %v453, %v505
        %507 = vmatmul.f32.gmra.mxu0 %v431
        %v508 = vpop.f32.mrf.mxu0
        %v509 = vadd.f32 %v453, %v508
        %510 = vmatmul.f32.gmra.mxu0 %v432
        %v511 = vpop.f32.mrf.mxu0
        %v512 = vadd.f32 %v453, %v511
        %513 = vmatmul.f32.gmra.mxu0 %v433
        %v514 = vpop.f32.mrf.mxu0
        %v515 = vadd.f32 %v453, %v514
        %516 = vmatmul.f32.gmra.mxu0 %v434
        %v517 = vpop.f32.mrf.mxu0
        %v518 = vadd.f32 %v453, %v517
        %519 = vdwg.mxu0
        %v520 = vmax.f32 %v473, 0.0
        %v521 = vmax.f32 %v476, 0.0
        %v522 = vmax.f32 %v479, 0.0
        %v523 = vmax.f32 %v482, 0.0
        %v524 = vmax.f32 %v485, 0.0
        %v525 = vmax.f32 %v488, 0.0
        %v526 = vmax.f32 %v491, 0.0
        %v527 = vmax.f32 %v494, 0.0
        %v528 = vmax.f32 %v497, 0.0
        %v529 = vmax.f32 %v500, 0.0
        %v530 = vmax.f32 %v503, 0.0
        %v531 = vmax.f32 %v506, 0.0
        %v532 = vmax.f32 %v509, 0.0
        %v533 = vmax.f32 %v512, 0.0
        %v534 = vmax.f32 %v515, 0.0
        %v535 = vmax.f32 %v518, 0.0
        %v536 = vld [vmem:[%s5] sm:$0xff]
        %v537 = vld [vmem:[%s5 + $0x8] sm:$0xff]
        %v538 = vld [vmem:[%s5 + $0x10] sm:$0xff]
        %v539 = vld [vmem:[%s5 + $0x18] sm:$0xff]
        %v540 = vld [vmem:[%s5 + $0x20] sm:$0xff]
        %v541 = vld [vmem:[%s5 + $0x28] sm:$0xff]
        %v542 = vld [vmem:[%s5 + $0x30] sm:$0xff]
        %v543 = vld [vmem:[%s5 + $0x38] sm:$0xff]
        %v544 = vld [vmem:[%s5 + $0x40] sm:$0xff]
        %v545 = vld [vmem:[%s5 + $0x48] sm:$0xff]
        %v546 = vld [vmem:[%s5 + $0x50] sm:$0xff]
        %v547 = vld [vmem:[%s5 + $0x58] sm:$0xff]
        %v548 = vld [vmem:[%s5 + $0x60] sm:$0xff]
        %v549 = vld [vmem:[%s5 + $0x68] sm:$0xff]
        %v550 = vld [vmem:[%s5 + $0x70] sm:$0xff]
        %v551 = vld [vmem:[%s5 + $0x78] sm:$0xff]
        %v552 = vld [vmem:[%s6] sm:$0x1]
        %v554 = vperm.slane %v552, 0
        %556 = vmatpush.msra.mxu0 %v551
        %557 = vmatpush.msra.mxu0 %v550
        %558 = vmatpush.msra.mxu0 %v549
        %559 = vmatpush.msra.mxu0 %v548
        %560 = vmatpush.msra.mxu0 %v547
        %561 = vmatpush.msra.mxu0 %v546
        %562 = vmatpush.msra.mxu0 %v545
        %563 = vmatpush.msra.mxu0 %v544
        %564 = vmatpush.msra.mxu0 %v543
        %565 = vmatpush.msra.mxu0 %v542
        %566 = vmatpush.msra.mxu0 %v541
        %567 = vmatpush.msra.mxu0 %v540
        %568 = vmatpush.msra.mxu0 %v539
        %569 = vmatpush.msra.mxu0 %v538
        %570 = vmatpush.msra.mxu0 %v537
        %571 = vmatpush.msra.mxu0 %v536
        %572 = vmatmul.f32.gmra.mxu0 %v520
        %v573 = vpop.f32.mrf.mxu0
        %v574 = vadd.f32 %v554, %v573
        %575 = vmatmul.f32.gmra.mxu0 %v521
        %v576 = vpop.f32.mrf.mxu0
        %v577 = vadd.f32 %v554, %v576
        %578 = vmatmul.f32.gmra.mxu0 %v522
        %v579 = vpop.f32.mrf.mxu0
        %v580 = vadd.f32 %v554, %v579
        %581 = vmatmul.f32.gmra.mxu0 %v523
        %v582 = vpop.f32.mrf.mxu0
        %v583 = vadd.f32 %v554, %v582
        %584 = vmatmul.f32.gmra.mxu0 %v524
        %v585 = vpop.f32.mrf.mxu0
        %v586 = vadd.f32 %v554, %v585
        %587 = vmatmul.f32.gmra.mxu0 %v525
        %v588 = vpop.f32.mrf.mxu0
        %v589 = vadd.f32 %v554, %v588
        %590 = vmatmul.f32.gmra.mxu0 %v526
        %v591 = vpop.f32.mrf.mxu0
        %v592 = vadd.f32 %v554, %v591
        %593 = vmatmul.f32.gmra.mxu0 %v527
        %v594 = vpop.f32.mrf.mxu0
        %v595 = vadd.f32 %v554, %v594
        %596 = vmatmul.f32.gmra.mxu0 %v528
        %v597 = vpop.f32.mrf.mxu0
        %v598 = vadd.f32 %v554, %v597
        %599 = vmatmul.f32.gmra.mxu0 %v529
        %v600 = vpop.f32.mrf.mxu0
        %v601 = vadd.f32 %v554, %v600
        %602 = vmatmul.f32.gmra.mxu0 %v530
        %v603 = vpop.f32.mrf.mxu0
        %v604 = vadd.f32 %v554, %v603
        %605 = vmatmul.f32.gmra.mxu0 %v531
        %v606 = vpop.f32.mrf.mxu0
        %v607 = vadd.f32 %v554, %v606
        %608 = vmatmul.f32.gmra.mxu0 %v532
        %v609 = vpop.f32.mrf.mxu0
        %v610 = vadd.f32 %v554, %v609
        %611 = vmatmul.f32.gmra.mxu0 %v533
        %v612 = vpop.f32.mrf.mxu0
        %v613 = vadd.f32 %v554, %v612
        %614 = vmatmul.f32.gmra.mxu0 %v534
        %v615 = vpop.f32.mrf.mxu0
        %v616 = vadd.f32 %v554, %v615
        %617 = vmatmul.f32.gmra.mxu0 %v535
        %v618 = vpop.f32.mrf.mxu0
        %v619 = vadd.f32 %v554, %v618
        %620 = vdwg.mxu0
        %v621 = vlaneseq
        %v622 = vand.u32 %v621, 127
        %vm623 = vcmp.lt.s32.totalorder %v622, 8
        %v624 = vsel %vm623, %v574, -inf
        %v625 = vsel %vm623, %v577, -inf
        %v626 = vsel %vm623, %v580, -inf
        %v627 = vsel %vm623, %v583, -inf
        %v628 = vsel %vm623, %v586, -inf
        %v629 = vsel %vm623, %v589, -inf
        %v630 = vsel %vm623, %v592, -inf
        %v631 = vsel %vm623, %v595, -inf
        %v632 = vsel %vm623, %v598, -inf
        %v633 = vsel %vm623, %v601, -inf
        %v634 = vsel %vm623, %v604, -inf
        %v635 = vsel %vm623, %v607, -inf
        %v636 = vsel %vm623, %v610, -inf
        %v637 = vsel %vm623, %v613, -inf
        %v638 = vsel %vm623, %v616, -inf
        %v639 = vsel %vm623, %v619, -inf
        %640 = vmax.xlane.f32.xlu0 %v624
        %v641 = vpop.xlane.xlu0 %640
        %642 = vmax.xlane.f32.xlu0 %v625
        %v643 = vpop.xlane.xlu0 %642
        %644 = vmax.xlane.f32.xlu0 %v626
        %v645 = vpop.xlane.xlu0 %644
        %646 = vmax.xlane.f32.xlu0 %v627
        %v647 = vpop.xlane.xlu0 %646
        %648 = vmax.xlane.f32.xlu0 %v628
        %v649 = vpop.xlane.xlu0 %648
        %650 = vmax.xlane.f32.xlu0 %v629
        %v651 = vpop.xlane.xlu0 %650
        %652 = vmax.xlane.f32.xlu0 %v630
        %v653 = vpop.xlane.xlu0 %652
        %654 = vmax.xlane.f32.xlu0 %v631
        %v655 = vpop.xlane.xlu0 %654
        %656 = vmax.xlane.f32.xlu0 %v632
        %v657 = vpop.xlane.xlu0 %656
        %658 = vmax.xlane.f32.xlu0 %v633
        %v659 = vpop.xlane.xlu0 %658
        %660 = vmax.xlane.f32.xlu0 %v634
        %v661 = vpop.xlane.xlu0 %660
        %662 = vmax.xlane.f32.xlu0 %v635
        %v663 = vpop.xlane.xlu0 %662
        %664 = vmax.xlane.f32.xlu0 %v636
        %v665 = vpop.xlane.xlu0 %664
        %666 = vmax.xlane.f32.xlu0 %v637
        %v667 = vpop.xlane.xlu0 %666
        %668 = vmax.xlane.f32.xlu0 %v638
        %v669 = vpop.xlane.xlu0 %668
        %670 = vmax.xlane.f32.xlu0 %v639
        %v671 = vpop.xlane.xlu0 %670
        %v672 = vsub.f32 %v574, %v641
        %v673 = vsub.f32 %v577, %v643
        %v674 = vsub.f32 %v580, %v645
        %v675 = vsub.f32 %v583, %v647
        %v676 = vsub.f32 %v586, %v649
        %v677 = vsub.f32 %v589, %v651
        %v678 = vsub.f32 %v592, %v653
        %v679 = vsub.f32 %v595, %v655
        %v680 = vsub.f32 %v598, %v657
        %v681 = vsub.f32 %v601, %v659
        %v682 = vsub.f32 %v604, %v661
        %v683 = vsub.f32 %v607, %v663
        %v684 = vsub.f32 %v610, %v665
        %v685 = vsub.f32 %v613, %v667
        %v686 = vsub.f32 %v616, %v669
        %v687 = vsub.f32 %v619, %v671
        %v688 = vmul.f32 %v672, 1.442695
        %v689 = vpow.pop %v688
        %v690 = vmul.f32 %v673, 1.442695
        %v691 = vpow.pop %v690
        %v692 = vmul.f32 %v674, 1.442695
        %v693 = vpow.pop %v692
        %v694 = vmul.f32 %v675, 1.442695
        %v695 = vpow.pop %v694
        %v696 = vmul.f32 %v676, 1.442695
        %v697 = vpow.pop %v696
        %v698 = vmul.f32 %v677, 1.442695
        %v699 = vpow.pop %v698
        %v700 = vmul.f32 %v678, 1.442695
        %v701 = vpow.pop %v700
        %v702 = vmul.f32 %v679, 1.442695
        %v703 = vpow.pop %v702
        %v704 = vmul.f32 %v680, 1.442695
        %v705 = vpow.pop %v704
        %v706 = vmul.f32 %v681, 1.442695
        %v707 = vpow.pop %v706
        %v708 = vmul.f32 %v682, 1.442695
        %v709 = vpow.pop %v708
        %v710 = vmul.f32 %v683, 1.442695
        %v711 = vpow.pop %v710
        %v712 = vmul.f32 %v684, 1.442695
        %v713 = vpow.pop %v712
        %v714 = vmul.f32 %v685, 1.442695
        %v715 = vpow.pop %v714
        %v716 = vmul.f32 %v686, 1.442695
        %v717 = vpow.pop %v716
        %v718 = vmul.f32 %v687, 1.442695
        %v719 = vpow.pop %v718
        %v720 = vsel %vm623, %v689, 0.0
        %v721 = vsel %vm623, %v691, 0.0
        %v722 = vsel %vm623, %v693, 0.0
        %v723 = vsel %vm623, %v695, 0.0
        %v724 = vsel %vm623, %v697, 0.0
        %v725 = vsel %vm623, %v699, 0.0
        %v726 = vsel %vm623, %v701, 0.0
        %v727 = vsel %vm623, %v703, 0.0
        %v728 = vsel %vm623, %v705, 0.0
        %v729 = vsel %vm623, %v707, 0.0
        %v730 = vsel %vm623, %v709, 0.0
        %v731 = vsel %vm623, %v711, 0.0
        %v732 = vsel %vm623, %v713, 0.0
        %v733 = vsel %vm623, %v715, 0.0
        %v734 = vsel %vm623, %v717, 0.0
        %v735 = vsel %vm623, %v719, 0.0
        %736 = vadd.xlane.f32.xlu0 %v720
        %v737 = vpop.xlane.xlu0 %736
        %738 = vadd.xlane.f32.xlu0 %v721
        %v739 = vpop.xlane.xlu0 %738
        %740 = vadd.xlane.f32.xlu0 %v722
        %v741 = vpop.xlane.xlu0 %740
        %742 = vadd.xlane.f32.xlu0 %v723
        %v743 = vpop.xlane.xlu0 %742
        %744 = vadd.xlane.f32.xlu0 %v724
        %v745 = vpop.xlane.xlu0 %744
        %746 = vadd.xlane.f32.xlu0 %v725
        %v747 = vpop.xlane.xlu0 %746
        %748 = vadd.xlane.f32.xlu0 %v726
        %v749 = vpop.xlane.xlu0 %748
        %750 = vadd.xlane.f32.xlu0 %v727
        %v751 = vpop.xlane.xlu0 %750
        %752 = vadd.xlane.f32.xlu0 %v728
        %v753 = vpop.xlane.xlu0 %752
        %754 = vadd.xlane.f32.xlu0 %v729
        %v755 = vpop.xlane.xlu0 %754
        %756 = vadd.xlane.f32.xlu0 %v730
        %v757 = vpop.xlane.xlu0 %756
        %758 = vadd.xlane.f32.xlu0 %v731
        %v759 = vpop.xlane.xlu0 %758
        %760 = vadd.xlane.f32.xlu0 %v732
        %v761 = vpop.xlane.xlu0 %760
        %762 = vadd.xlane.f32.xlu0 %v733
        %v763 = vpop.xlane.xlu0 %762
        %764 = vadd.xlane.f32.xlu0 %v734
        %v765 = vpop.xlane.xlu0 %764
        %766 = vadd.xlane.f32.xlu0 %v735
        %v767 = vpop.xlane.xlu0 %766
        %v768 = vrcp.pop %v737
        %v769 = vmul.f32 %v737, %v768
        %v770 = vsub.f32 1.0, %v769
        %v771 = vmul.f32 %v768, %v770
        %v772 = vadd.f32 %v768, %v771
        %vm773 = vweird.f32 %v737
        %vm774 = vweird.f32 %v768
        %vm775 = vmor %vm773, %vm774
        %v776 = vsel %vm775, %v768, %v772
        %v777 = vand.u32 2147483647, %v737
        %vm778 = vcmp.eq.f32.partialorder %v777, 8.507059e+37
        %v779 = vand.u32 %v737, 2147483648
        %v780 = vor.u32 1.1754944e-38, %v779
        %v781 = vsel %vm778, %v780, %v776
        %v782 = vmul.f32 %v720, %v781
        %v783 = vrcp.pop %v739
        %v784 = vmul.f32 %v739, %v783
        %v785 = vsub.f32 1.0, %v784
        %v786 = vmul.f32 %v783, %v785
        %v787 = vadd.f32 %v783, %v786
        %vm788 = vweird.f32 %v739
        %vm789 = vweird.f32 %v783
        %vm790 = vmor %vm788, %vm789
        %v791 = vsel %vm790, %v783, %v787
        %v792 = vand.u32 2147483647, %v739
        %vm793 = vcmp.eq.f32.partialorder %v792, 8.507059e+37
        %v794 = vand.u32 %v739, 2147483648
        %v795 = vor.u32 1.1754944e-38, %v794
        %v796 = vsel %vm793, %v795, %v791
        %v797 = vmul.f32 %v721, %v796
        %v798 = vrcp.pop %v741
        %v799 = vmul.f32 %v741, %v798
        %v800 = vsub.f32 1.0, %v799
        %v801 = vmul.f32 %v798, %v800
        %v802 = vadd.f32 %v798, %v801
        %vm803 = vweird.f32 %v741
        %vm804 = vweird.f32 %v798
        %vm805 = vmor %vm803, %vm804
        %v806 = vsel %vm805, %v798, %v802
        %v807 = vand.u32 2147483647, %v741
        %vm808 = vcmp.eq.f32.partialorder %v807, 8.507059e+37
        %v809 = vand.u32 %v741, 2147483648
        %v810 = vor.u32 1.1754944e-38, %v809
        %v811 = vsel %vm808, %v810, %v806
        %v812 = vmul.f32 %v722, %v811
        %v813 = vrcp.pop %v743
        %v814 = vmul.f32 %v743, %v813
        %v815 = vsub.f32 1.0, %v814
        %v816 = vmul.f32 %v813, %v815
        %v817 = vadd.f32 %v813, %v816
        %vm818 = vweird.f32 %v743
        %vm819 = vweird.f32 %v813
        %vm820 = vmor %vm818, %vm819
        %v821 = vsel %vm820, %v813, %v817
        %v822 = vand.u32 2147483647, %v743
        %vm823 = vcmp.eq.f32.partialorder %v822, 8.507059e+37
        %v824 = vand.u32 %v743, 2147483648
        %v825 = vor.u32 1.1754944e-38, %v824
        %v826 = vsel %vm823, %v825, %v821
        %v827 = vmul.f32 %v723, %v826
        %v828 = vrcp.pop %v745
        %v829 = vmul.f32 %v745, %v828
        %v830 = vsub.f32 1.0, %v829
        %v831 = vmul.f32 %v828, %v830
        %v832 = vadd.f32 %v828, %v831
        %vm833 = vweird.f32 %v745
        %vm834 = vweird.f32 %v828
        %vm835 = vmor %vm833, %vm834
        %v836 = vsel %vm835, %v828, %v832
        %v837 = vand.u32 2147483647, %v745
        %vm838 = vcmp.eq.f32.partialorder %v837, 8.507059e+37
        %v839 = vand.u32 %v745, 2147483648
        %v840 = vor.u32 1.1754944e-38, %v839
        %v841 = vsel %vm838, %v840, %v836
        %v842 = vmul.f32 %v724, %v841
        %v843 = vrcp.pop %v747
        %v844 = vmul.f32 %v747, %v843
        %v845 = vsub.f32 1.0, %v844
        %v846 = vmul.f32 %v843, %v845
        %v847 = vadd.f32 %v843, %v846
        %vm848 = vweird.f32 %v747
        %vm849 = vweird.f32 %v843
        %vm850 = vmor %vm848, %vm849
        %v851 = vsel %vm850, %v843, %v847
        %v852 = vand.u32 2147483647, %v747
        %vm853 = vcmp.eq.f32.partialorder %v852, 8.507059e+37
        %v854 = vand.u32 %v747, 2147483648
        %v855 = vor.u32 1.1754944e-38, %v854
        %v856 = vsel %vm853, %v855, %v851
        %v857 = vmul.f32 %v725, %v856
        %v858 = vrcp.pop %v749
        %v859 = vmul.f32 %v749, %v858
        %v860 = vsub.f32 1.0, %v859
        %v861 = vmul.f32 %v858, %v860
        %v862 = vadd.f32 %v858, %v861
        %vm863 = vweird.f32 %v749
        %vm864 = vweird.f32 %v858
        %vm865 = vmor %vm863, %vm864
        %v866 = vsel %vm865, %v858, %v862
        %v867 = vand.u32 2147483647, %v749
        %vm868 = vcmp.eq.f32.partialorder %v867, 8.507059e+37
        %v869 = vand.u32 %v749, 2147483648
        %v870 = vor.u32 1.1754944e-38, %v869
        %v871 = vsel %vm868, %v870, %v866
        %v872 = vmul.f32 %v726, %v871
        %v873 = vrcp.pop %v751
        %v874 = vmul.f32 %v751, %v873
        %v875 = vsub.f32 1.0, %v874
        %v876 = vmul.f32 %v873, %v875
        %v877 = vadd.f32 %v873, %v876
        %vm878 = vweird.f32 %v751
        %vm879 = vweird.f32 %v873
        %vm880 = vmor %vm878, %vm879
        %v881 = vsel %vm880, %v873, %v877
        %v882 = vand.u32 2147483647, %v751
        %vm883 = vcmp.eq.f32.partialorder %v882, 8.507059e+37
        %v884 = vand.u32 %v751, 2147483648
        %v885 = vor.u32 1.1754944e-38, %v884
        %v886 = vsel %vm883, %v885, %v881
        %v887 = vmul.f32 %v727, %v886
        %v888 = vrcp.pop %v753
        %v889 = vmul.f32 %v753, %v888
        %v890 = vsub.f32 1.0, %v889
        %v891 = vmul.f32 %v888, %v890
        %v892 = vadd.f32 %v888, %v891
        %vm893 = vweird.f32 %v753
        %vm894 = vweird.f32 %v888
        %vm895 = vmor %vm893, %vm894
        %v896 = vsel %vm895, %v888, %v892
        %v897 = vand.u32 2147483647, %v753
        %vm898 = vcmp.eq.f32.partialorder %v897, 8.507059e+37
        %v899 = vand.u32 %v753, 2147483648
        %v900 = vor.u32 1.1754944e-38, %v899
        %v901 = vsel %vm898, %v900, %v896
        %v902 = vmul.f32 %v728, %v901
        %v903 = vrcp.pop %v755
        %v904 = vmul.f32 %v755, %v903
        %v905 = vsub.f32 1.0, %v904
        %v906 = vmul.f32 %v903, %v905
        %v907 = vadd.f32 %v903, %v906
        %vm908 = vweird.f32 %v755
        %vm909 = vweird.f32 %v903
        %vm910 = vmor %vm908, %vm909
        %v911 = vsel %vm910, %v903, %v907
        %v912 = vand.u32 2147483647, %v755
        %vm913 = vcmp.eq.f32.partialorder %v912, 8.507059e+37
        %v914 = vand.u32 %v755, 2147483648
        %v915 = vor.u32 1.1754944e-38, %v914
        %v916 = vsel %vm913, %v915, %v911
        %v917 = vmul.f32 %v729, %v916
        %v918 = vrcp.pop %v757
        %v919 = vmul.f32 %v757, %v918
        %v920 = vsub.f32 1.0, %v919
        %v921 = vmul.f32 %v918, %v920
        %v922 = vadd.f32 %v918, %v921
        %vm923 = vweird.f32 %v757
        %vm924 = vweird.f32 %v918
        %vm925 = vmor %vm923, %vm924
        %v926 = vsel %vm925, %v918, %v922
        %v927 = vand.u32 2147483647, %v757
        %vm928 = vcmp.eq.f32.partialorder %v927, 8.507059e+37
        %v929 = vand.u32 %v757, 2147483648
        %v930 = vor.u32 1.1754944e-38, %v929
        %v931 = vsel %vm928, %v930, %v926
        %v932 = vmul.f32 %v730, %v931
        %v933 = vrcp.pop %v759
        %v934 = vmul.f32 %v759, %v933
        %v935 = vsub.f32 1.0, %v934
        %v936 = vmul.f32 %v933, %v935
        %v937 = vadd.f32 %v933, %v936
        %vm938 = vweird.f32 %v759
        %vm939 = vweird.f32 %v933
        %vm940 = vmor %vm938, %vm939
        %v941 = vsel %vm940, %v933, %v937
        %v942 = vand.u32 2147483647, %v759
        %vm943 = vcmp.eq.f32.partialorder %v942, 8.507059e+37
        %v944 = vand.u32 %v759, 2147483648
        %v945 = vor.u32 1.1754944e-38, %v944
        %v946 = vsel %vm943, %v945, %v941
        %v947 = vmul.f32 %v731, %v946
        %v948 = vrcp.pop %v761
        %v949 = vmul.f32 %v761, %v948
        %v950 = vsub.f32 1.0, %v949
        %v951 = vmul.f32 %v948, %v950
        %v952 = vadd.f32 %v948, %v951
        %vm953 = vweird.f32 %v761
        %vm954 = vweird.f32 %v948
        %vm955 = vmor %vm953, %vm954
        %v956 = vsel %vm955, %v948, %v952
        %v957 = vand.u32 2147483647, %v761
        %vm958 = vcmp.eq.f32.partialorder %v957, 8.507059e+37
        %v959 = vand.u32 %v761, 2147483648
        %v960 = vor.u32 1.1754944e-38, %v959
        %v961 = vsel %vm958, %v960, %v956
        %v962 = vmul.f32 %v732, %v961
        %v963 = vrcp.pop %v763
        %v964 = vmul.f32 %v763, %v963
        %v965 = vsub.f32 1.0, %v964
        %v966 = vmul.f32 %v963, %v965
        %v967 = vadd.f32 %v963, %v966
        %vm968 = vweird.f32 %v763
        %vm969 = vweird.f32 %v963
        %vm970 = vmor %vm968, %vm969
        %v971 = vsel %vm970, %v963, %v967
        %v972 = vand.u32 2147483647, %v763
        %vm973 = vcmp.eq.f32.partialorder %v972, 8.507059e+37
        %v974 = vand.u32 %v763, 2147483648
        %v975 = vor.u32 1.1754944e-38, %v974
        %v976 = vsel %vm973, %v975, %v971
        %v977 = vmul.f32 %v733, %v976
        %v978 = vrcp.pop %v765
        %v979 = vmul.f32 %v765, %v978
        %v980 = vsub.f32 1.0, %v979
        %v981 = vmul.f32 %v978, %v980
        %v982 = vadd.f32 %v978, %v981
        %vm983 = vweird.f32 %v765
        %vm984 = vweird.f32 %v978
        %vm985 = vmor %vm983, %vm984
        %v986 = vsel %vm985, %v978, %v982
        %v987 = vand.u32 2147483647, %v765
        %vm988 = vcmp.eq.f32.partialorder %v987, 8.507059e+37
        %v989 = vand.u32 %v765, 2147483648
        %v990 = vor.u32 1.1754944e-38, %v989
        %v991 = vsel %vm988, %v990, %v986
        %v992 = vmul.f32 %v734, %v991
        %v993 = vrcp.pop %v767
        %v994 = vmul.f32 %v767, %v993
        %v995 = vsub.f32 1.0, %v994
        %v996 = vmul.f32 %v993, %v995
        %v997 = vadd.f32 %v993, %v996
        %vm998 = vweird.f32 %v767
        %vm999 = vweird.f32 %v993
        %vm1000 = vmor %vm998, %vm999
        %v1001 = vsel %vm1000, %v993, %v997
        %v1002 = vand.u32 2147483647, %v767
        %vm1003 = vcmp.eq.f32.partialorder %v1002, 8.507059e+37
        %v1004 = vand.u32 %v767, 2147483648
        %v1005 = vor.u32 1.1754944e-38, %v1004
        %v1006 = vsel %vm1003, %v1005, %v1001
        %v1007 = vmul.f32 %v735, %v1006
        %v1008 = vmax.f32 %v574, 0.0
        %v1009 = vmax.f32 %v577, 0.0
        %v1010 = vmax.f32 %v580, 0.0
        %v1011 = vmax.f32 %v583, 0.0
        %v1012 = vmax.f32 %v586, 0.0
        %v1013 = vmax.f32 %v589, 0.0
        %v1014 = vmax.f32 %v592, 0.0
        %v1015 = vmax.f32 %v595, 0.0
        %v1016 = vmax.f32 %v598, 0.0
        %v1017 = vmax.f32 %v601, 0.0
        %v1018 = vmax.f32 %v604, 0.0
        %v1019 = vmax.f32 %v607, 0.0
        %v1020 = vmax.f32 %v610, 0.0
        %v1021 = vmax.f32 %v613, 0.0
        %v1022 = vmax.f32 %v616, 0.0
        %v1023 = vmax.f32 %v619, 0.0
        %v1024 = vand.u32 2147483647, %v574
        %v1025 = vand.u32 2147483647, %v577
        %v1026 = vand.u32 2147483647, %v580
        %v1027 = vand.u32 2147483647, %v583
        %v1028 = vand.u32 2147483647, %v586
        %v1029 = vand.u32 2147483647, %v589
        %v1030 = vand.u32 2147483647, %v592
        %v1031 = vand.u32 2147483647, %v595
        %v1032 = vand.u32 2147483647, %v598
        %v1033 = vand.u32 2147483647, %v601
        %v1034 = vand.u32 2147483647, %v604
        %v1035 = vand.u32 2147483647, %v607
        %v1036 = vand.u32 2147483647, %v610
        %v1037 = vand.u32 2147483647, %v613
        %v1038 = vand.u32 2147483647, %v616
        %v1039 = vand.u32 2147483647, %v619
        %v1040 = vsub.f32 0.0, %v1024
        %v1041 = vsub.f32 0.0, %v1025
        %v1042 = vsub.f32 0.0, %v1026
        %v1043 = vsub.f32 0.0, %v1027
        %v1044 = vsub.f32 0.0, %v1028
        %v1045 = vsub.f32 0.0, %v1029
        %v1046 = vsub.f32 0.0, %v1030
        %v1047 = vsub.f32 0.0, %v1031
        %v1048 = vsub.f32 0.0, %v1032
        %v1049 = vsub.f32 0.0, %v1033
        %v1050 = vsub.f32 0.0, %v1034
        %v1051 = vsub.f32 0.0, %v1035
        %v1052 = vsub.f32 0.0, %v1036
        %v1053 = vsub.f32 0.0, %v1037
        %v1054 = vsub.f32 0.0, %v1038
        %v1055 = vsub.f32 0.0, %v1039
        %v1056 = vmul.f32 %v1040, 1.442695
        %v1057 = vpow.pop %v1056
        %v1058 = vmul.f32 %v1041, 1.442695
        %v1059 = vpow.pop %v1058
        %v1060 = vmul.f32 %v1042, 1.442695
        %v1061 = vpow.pop %v1060
        %v1062 = vmul.f32 %v1043, 1.442695
        %v1063 = vpow.pop %v1062
        %v1064 = vmul.f32 %v1044, 1.442695
        %v1065 = vpow.pop %v1064
        %v1066 = vmul.f32 %v1045, 1.442695
        %v1067 = vpow.pop %v1066
        %v1068 = vmul.f32 %v1046, 1.442695
        %v1069 = vpow.pop %v1068
        %v1070 = vmul.f32 %v1047, 1.442695
        %v1071 = vpow.pop %v1070
        %v1072 = vmul.f32 %v1048, 1.442695
        %v1073 = vpow.pop %v1072
        %v1074 = vmul.f32 %v1049, 1.442695
        %v1075 = vpow.pop %v1074
        %v1076 = vmul.f32 %v1050, 1.442695
        %v1077 = vpow.pop %v1076
        %v1078 = vmul.f32 %v1051, 1.442695
        %v1079 = vpow.pop %v1078
        %v1080 = vmul.f32 %v1052, 1.442695
        %v1081 = vpow.pop %v1080
        %v1082 = vmul.f32 %v1053, 1.442695
        %v1083 = vpow.pop %v1082
        %v1084 = vmul.f32 %v1054, 1.442695
        %v1085 = vpow.pop %v1084
        %v1086 = vmul.f32 %v1055, 1.442695
        %v1087 = vpow.pop %v1086
        %v1088 = vadd.f32 %v1057, 1.0
        %v1089 = vadd.f32 %v1059, 1.0
        %v1090 = vadd.f32 %v1061, 1.0
        %v1091 = vadd.f32 %v1063, 1.0
        %v1092 = vadd.f32 %v1065, 1.0
        %v1093 = vadd.f32 %v1067, 1.0
        %v1094 = vadd.f32 %v1069, 1.0
        %v1095 = vadd.f32 %v1071, 1.0
        %v1096 = vadd.f32 %v1073, 1.0
        %v1097 = vadd.f32 %v1075, 1.0
        %v1098 = vadd.f32 %v1077, 1.0
        %v1099 = vadd.f32 %v1079, 1.0
        %v1100 = vadd.f32 %v1081, 1.0
        %v1101 = vadd.f32 %v1083, 1.0
        %v1102 = vadd.f32 %v1085, 1.0
        %v1103 = vadd.f32 %v1087, 1.0
        %v1104 = vlog2.pop %v1088
        %v1105 = vmul.f32 %v1104, 0.6931472
        %v1106 = vlog2.pop %v1089
        %v1107 = vmul.f32 %v1106, 0.6931472
        %v1108 = vlog2.pop %v1090
        %v1109 = vmul.f32 %v1108, 0.6931472
        %v1110 = vlog2.pop %v1091
        %v1111 = vmul.f32 %v1110, 0.6931472
        %v1112 = vlog2.pop %v1092
        %v1113 = vmul.f32 %v1112, 0.6931472
        %v1114 = vlog2.pop %v1093
        %v1115 = vmul.f32 %v1114, 0.6931472
        %v1116 = vlog2.pop %v1094
        %v1117 = vmul.f32 %v1116, 0.6931472
        %v1118 = vlog2.pop %v1095
        %v1119 = vmul.f32 %v1118, 0.6931472
        %v1120 = vlog2.pop %v1096
        %v1121 = vmul.f32 %v1120, 0.6931472
        %v1122 = vlog2.pop %v1097
        %v1123 = vmul.f32 %v1122, 0.6931472
        %v1124 = vlog2.pop %v1098
        %v1125 = vmul.f32 %v1124, 0.6931472
        %v1126 = vlog2.pop %v1099
        %v1127 = vmul.f32 %v1126, 0.6931472
        %v1128 = vlog2.pop %v1100
        %v1129 = vmul.f32 %v1128, 0.6931472
        %v1130 = vlog2.pop %v1101
        %v1131 = vmul.f32 %v1130, 0.6931472
        %v1132 = vlog2.pop %v1102
        %v1133 = vmul.f32 %v1132, 0.6931472
        %v1134 = vlog2.pop %v1103
        %v1135 = vmul.f32 %v1134, 0.6931472
        %v1136 = vadd.f32 %v1008, %v1105
        %v1137 = vadd.f32 %v1009, %v1107
        %v1138 = vadd.f32 %v1010, %v1109
        %v1139 = vadd.f32 %v1011, %v1111
        %v1140 = vadd.f32 %v1012, %v1113
        %v1141 = vadd.f32 %v1013, %v1115
        %v1142 = vadd.f32 %v1014, %v1117
        %v1143 = vadd.f32 %v1015, %v1119
        %v1144 = vadd.f32 %v1016, %v1121
        %v1145 = vadd.f32 %v1017, %v1123
        %v1146 = vadd.f32 %v1018, %v1125
        %v1147 = vadd.f32 %v1019, %v1127
        %v1148 = vadd.f32 %v1020, %v1129
        %v1149 = vadd.f32 %v1021, %v1131
        %v1150 = vadd.f32 %v1022, %v1133
        %v1151 = vadd.f32 %v1023, %v1135
        %vm1152 = vcmp.lt.s32.totalorder %v622, 16
        %v1153 = vsel %vm1152, 1e-06, 0.001
        %v1154 = vadd.f32 %v1136, %v1153
        %v1155 = vadd.f32 %v1137, %v1153
        %v1156 = vadd.f32 %v1138, %v1153
        %v1157 = vadd.f32 %v1139, %v1153
        %v1158 = vadd.f32 %v1140, %v1153
        %v1159 = vadd.f32 %v1141, %v1153
        %v1160 = vadd.f32 %v1142, %v1153
        %v1161 = vadd.f32 %v1143, %v1153
        %v1162 = vadd.f32 %v1144, %v1153
        %v1163 = vadd.f32 %v1145, %v1153
        %v1164 = vadd.f32 %v1146, %v1153
        %v1165 = vadd.f32 %v1147, %v1153
        %v1166 = vadd.f32 %v1148, %v1153
        %v1167 = vadd.f32 %v1149, %v1153
        %v1168 = vadd.f32 %v1150, %v1153
        %v1169 = vadd.f32 %v1151, %v1153
        %v1170 = vsel %vm623, %v782, %v1154
        %v1171 = vsel %vm623, %v797, %v1155
        %v1172 = vsel %vm623, %v812, %v1156
        %v1173 = vsel %vm623, %v827, %v1157
        %v1174 = vsel %vm623, %v842, %v1158
        %v1175 = vsel %vm623, %v857, %v1159
        %v1176 = vsel %vm623, %v872, %v1160
        %v1177 = vsel %vm623, %v887, %v1161
        %v1178 = vsel %vm623, %v902, %v1162
        %v1179 = vsel %vm623, %v917, %v1163
        %v1180 = vsel %vm623, %v932, %v1164
        %v1181 = vsel %vm623, %v947, %v1165
        %v1182 = vsel %vm623, %v962, %v1166
        %v1183 = vsel %vm623, %v977, %v1167
        %v1184 = vsel %vm623, %v992, %v1168
        %v1185 = vsel %vm623, %v1007, %v1169
        %1186 = vst [vmem:[%s272] sm:$0xff] %v1170
        %1187 = vst [vmem:[%s272 + $0x8] sm:$0xff] %v1171
        %1188 = vst [vmem:[%s272 + $0x10] sm:$0xff] %v1172
        %1189 = vst [vmem:[%s272 + $0x18] sm:$0xff] %v1173
        %1190 = vst [vmem:[%s272 + $0x20] sm:$0xff] %v1174
        %1191 = vst [vmem:[%s272 + $0x28] sm:$0xff] %v1175
        %1192 = vst [vmem:[%s272 + $0x30] sm:$0xff] %v1176
        %1193 = vst [vmem:[%s272 + $0x38] sm:$0xff] %v1177
        %1194 = vst [vmem:[%s272 + $0x40] sm:$0xff] %v1178
        %1195 = vst [vmem:[%s272 + $0x48] sm:$0xff] %v1179
        %1196 = vst [vmem:[%s272 + $0x50] sm:$0xff] %v1180
        %1197 = vst [vmem:[%s272 + $0x58] sm:$0xff] %v1181
        %1198 = vst [vmem:[%s272 + $0x60] sm:$0xff] %v1182
        %1199 = vst [vmem:[%s272 + $0x68] sm:$0xff] %v1183
        %1200 = vst [vmem:[%s272 + $0x70] sm:$0xff] %v1184
        %1201 = vst [vmem:[%s272 + $0x78] sm:$0xff] %v1185
        %s1202 = sand.u32 %s181, 1
        %s1203 = scalar_lea.sflag [#allocation3], %s1202
        %s1204 = sand.u32 %s181, 1
        %s1205 = smul.addr %s1204, 128
        %s1206 = scalar_lea.vmem [#allocation2], %s1205
        // Predicated region
        $region49: #{tpu_custom_call.1} parent=47 // pred_check
          %p1207 = pneg %p191
        $region50: #{tpu_custom_call.1} parent=47 // pred_check_branch
          %1209 = sbr.rel (%p1207) target = $region52
        $region51: #{tpu_custom_call.1} parent=47 // pred_region
          %s1210 = smul.u32 16, %s21
          %1212 = vsyncadd %s1203, 0
          %s1213 = smul.addr %s1210, 8
          %s1214 = scalar_lea.hbm %s7, %s1213
          %s1215 = sshll.u32 %s1206, 4
          %s1216 = int_to_ptr.vmem [resolvable:$true] %s1215
          %s1217 = sshll.u32 %s1214, 4
          %s1218 = int_to_ptr.hbm [resolvable:$true] %s1217
          %1223 = dma.vmem_to_hbm [thread:$0]  %s1216, 2048, %s1218, %s1203, 128, 128, 8
        $region52: #{tpu_custom_call.1} parent=47 // pred_fallthru
          _
      $region48: #{tpu_custom_call.1} parent=5 // pred_fallthru
        _
      %p1224 = scmp.le.s32.totalorder 2, %s16
      // Predicated region
      $region53: #{tpu_custom_call.1} parent=5 // pred_check
        %p1225 = pneg %p1224
      $region54: #{tpu_custom_call.1} parent=5 // pred_check_branch
        %1227 = sbr.rel (%p1225) target = $region56
      $region55: #{tpu_custom_call.1} parent=5 // pred_region
        %s1228 = ssub.s32 %s16, 2
        // Predicated region
        $region57: #{tpu_custom_call.1} parent=55 // pred_check
          %p1229 = pneg %p197
        $region58: #{tpu_custom_call.1} parent=55 // pred_check_branch
          %1231 = sbr.rel (%p1229) target = $region60
        $region59: #{tpu_custom_call.1} parent=55 // pred_region
          %s1232 = sand.u32 %s182, 1
          %s1233 = scalar_lea.sflag [#allocation3], %s1232
          %s1234 = sand.u32 %s182, 1
          %s1235 = smul.addr %s1234, 128
          %s1236 = scalar_lea.vmem [#allocation2], %s1235
          %1238 = dma.done %s1233, 2048
        $region60: #{tpu_custom_call.1} parent=55 // pred_fallthru
          _
      $region56: #{tpu_custom_call.1} parent=5 // pred_fallthru
        _
    $region6: #{tpu_custom_call.1} parent=1 // loop_footer
      %s20 = sadd.s32 1, %s16
    $region7: #{tpu_custom_call.1} parent=1 // loop_footer_branch
      %15 = sbr.rel target = $region3
    $region8: #{tpu_custom_call.1} parent=1 // loop_exit
      _
    %1239 = vsyncpa [#allocation3], 1
    %s1240 = scalar_lea.sflag [#allocation3], 1
    %1241 = vsyncpa %s1240, 1

</llo_original>
